<compile_context>
chip_gen: v6e
topology: v6e:2x2x1
jax: 0.10.0
libtpu: 0.0.40
codegen_flags: <defaults>
</compile_context>

<pallas_src>
import jax
import jax.numpy as jnp
from jax.experimental import pallas as pl
from jax.experimental.pallas import tpu as pltpu

HIDDEN = 256                # per-net hidden width
FUSED_H = 2 * HIDDEN        # fused width (both nets side by side on lanes)
DEFAULT_TILE_B = 1024       # max batch rows per grid step (multiple of 8)


def _round_up(x, m):
    return ((x + m - 1) // m) * m


def _choose_tiling(batch, tile_b):
    """Near-even batch tiles; >=2 grid steps for largish batches (v7x has 2 TCs)."""
    steps = -(-batch // tile_b)          # ceil div
    if steps == 1 and batch >= 512:
        steps = 2                        # keep both v7x TensorCores busy
    tb = _round_up(-(-batch // steps), 8)
    return tb, steps


def twinq_kernel(x_ref, w1_ref, b1_ref, w2_1_ref, b2_1_ref, w2_2_ref, b2_2_ref,
                 w3_ref, b3_ref, o_ref):
    # Fused first layer of BOTH nets: (TILE_B, 512) = x @ W1 + b1 (single K=A+S matmul).
    h1 = jnp.dot(x_ref[...], w1_ref[...], preferred_element_type=jnp.float32) + b1_ref[...]
    h1 = jnp.maximum(h1, 0.0).astype(jnp.bfloat16)            # ReLU, back to bf16 for layer 2

    # Layer 2 stays per-net (block-diagonal fusion would double the FLOPs).
    h2_1 = jnp.dot(h1[:, :HIDDEN], w2_1_ref[...],
                   preferred_element_type=jnp.float32) + b2_1_ref[...]
    h2_2 = jnp.dot(h1[:, HIDDEN:], w2_2_ref[...],
                   preferred_element_type=jnp.float32) + b2_2_ref[...]
    h2 = jnp.concatenate([jnp.maximum(h2_1, 0.0).astype(jnp.bfloat16),
                          jnp.maximum(h2_2, 0.0).astype(jnp.bfloat16)], axis=-1)  # (TILE_B, 512)

    # 256->1 heads on the MXU: block-diagonal W3 (512, 128), only columns 0/1 are live.
    q = jnp.dot(h2, w3_ref[...], preferred_element_type=jnp.float32)   # (TILE_B, 128)
    q12 = q[:, 0:2] + b3_ref[...]                                       # (TILE_B, 2)
    o_ref[...] = jnp.min(q12, axis=-1, keepdims=True)                   # torch.min(q1, q2)


def prepare_twinq_params(params):
    """Convert 12 natural per-net params (f32, (in, out) layout) into the fused kernel layout."""
    (w1_1, b1_1, w2_1, b2_1, w3_1, b3_1,
     w1_2, b1_2, w2_2, b2_2, w3_2, b3_2) = params
    # Fuse both nets' first layers along the output axis: (D_in, 512), (1, 512).
    w1 = jnp.concatenate([w1_1, w1_2], axis=-1).astype(jnp.bfloat16)
    b1 = jnp.concatenate([b1_1, b1_2], axis=-1).astype(jnp.float32)
    # Block-diagonal head weight, lane-padded to 128 output columns (same MXU push count).
    w3 = jnp.zeros((FUSED_H, 128), jnp.float32)
    w3 = w3.at[:HIDDEN, 0].set(w3_1[:, 0])
    w3 = w3.at[HIDDEN:, 1].set(w3_2[:, 0])
    w3 = w3.astype(jnp.bfloat16)
    b3 = jnp.concatenate([b3_1, b3_2], axis=-1).astype(jnp.float32)     # (1, 2)
    return (w1, b1,
            w2_1.astype(jnp.bfloat16), b2_1.astype(jnp.float32),
            w2_2.astype(jnp.bfloat16), b2_2.astype(jnp.float32),
            w3, b3)


def twinq_forward(action, condition, params, *, tile_b=DEFAULT_TILE_B):
    """action: (B, A), condition: (B, S) or None; params: 12 natural f32 arrays (q1 then q2)."""
    x = action if condition is None else jnp.concatenate([action, condition], axis=-1)
    x = x.astype(jnp.bfloat16)
    B, D_in = x.shape
    kparams = prepare_twinq_params(params)

    tb, steps = _choose_tiling(B, tile_b)
    pb = tb * steps
    if pb != B:
        x = jnp.pad(x, ((0, pb - B), (0, 0)))

    def batch_spec(d):
        return pl.BlockSpec((tb, d), lambda i: (i, 0))

    def resident_spec(arr):
        # Constant index_map -> block revisited every step -> stays VMEM-resident (no re-DMA).
        # TODO(synk): could single-buffer these with pipeline_mode=pl.Buffered(1) to shave
        # a few hundred KiB of VMEM; left double-buffered for maximum compile-compat.
        return pl.BlockSpec(arr.shape, lambda i: (0, 0))

    out = pl.pallas_call(
        twinq_kernel,
        out_shape=jax.ShapeDtypeStruct((pb, 1), jnp.float32),
        grid=(steps,),
        in_specs=[batch_spec(D_in)] + [resident_spec(p) for p in kparams],
        out_specs=pl.BlockSpec((tb, 1), lambda i: (i, 0)),
        compiler_params=pltpu.CompilerParams(
            dimension_semantics=("parallel",)),   # shard batch tiles over v7x's 2 TCs
    )(x, *kparams)
    return out[:B]


def init_twinq_params(key, action_dim, state_dim, hidden=HIDDEN):
    """Deterministic synthetic init. Natural layout: weights (in_features, out_features), f32."""
    d_in = action_dim + state_dim

    def init_net(k):
        k1, k2, k3, k4, k5, k6 = jax.random.split(k, 6)
        w1 = jax.random.normal(k1, (d_in, hidden), jnp.float32) * (1.0 / jnp.sqrt(d_in))
        b1 = jax.random.normal(k2, (1, hidden), jnp.float32) * 0.01
        w2 = jax.random.normal(k3, (hidden, hidden), jnp.float32) * (1.0 / jnp.sqrt(hidden))
        b2 = jax.random.normal(k4, (1, hidden), jnp.float32) * 0.01
        w3 = jax.random.normal(k5, (hidden, 1), jnp.float32) * (1.0 / jnp.sqrt(hidden))
        b3 = jax.random.normal(k6, (1, 1), jnp.float32) * 0.01
        return (w1, b1, w2, b2, w3, b3)

    kq1, kq2 = jax.random.split(key)
    return init_net(kq1) + init_net(kq2)


def twinq_reference(action, condition, params):
    """Pure-JAX reference mirroring the kernel's numeric path (bf16 matmuls, f32 accumulation)."""
    (w1_1, b1_1, w2_1, b2_1, w3_1, b3_1,
     w1_2, b1_2, w2_2, b2_2, w3_2, b3_2) = params
    x = action if condition is None else jnp.concatenate([action, condition], axis=-1)
    x = x.astype(jnp.bfloat16)

    def net(w1, b1, w2, b2, w3, b3):
        h1 = jnp.dot(x, w1.astype(jnp.bfloat16), preferred_element_type=jnp.float32) + b1
        h1 = jnp.maximum(h1, 0.0).astype(jnp.bfloat16)
        h2 = jnp.dot(h1, w2.astype(jnp.bfloat16), preferred_element_type=jnp.float32) + b2
        h2 = jnp.maximum(h2, 0.0).astype(jnp.bfloat16)
        return jnp.dot(h2, w3.astype(jnp.bfloat16), preferred_element_type=jnp.float32) + b3

    q1 = net(w1_1, b1_1, w2_1, b2_1, w3_1, b3_1)
    q2 = net(w1_2, b1_2, w2_2, b2_2, w3_2, b3_2)
    return jnp.minimum(q1, q2)


if __name__ == "__main__":
    key = jax.random.PRNGKey(0)
    k_params, k_act, k_cond = jax.random.split(key, 3)

    action_dim, state_dim = 16, 16
    params = init_twinq_params(k_params, action_dim, state_dim)

    # Small, tile-aligned batch.
    batch = 8
    action = jax.random.normal(k_act, (batch, action_dim), jnp.float32)
    condition = jax.random.normal(k_cond, (batch, state_dim), jnp.float32)
    out = jax.block_until_ready(twinq_forward(action, condition, params))
    ref = twinq_reference(action, condition, params)
    assert out.shape == (batch, 1)
    assert jnp.allclose(out, ref, atol=1e-2, rtol=1e-2), "mismatch vs reference (batch=8)"

    # Non-multiple-of-8 batch to exercise the row-padding path.
    batch2 = 12
    action2 = jax.random.normal(k_act, (batch2, action_dim), jnp.float32)
    condition2 = jax.random.normal(k_cond, (batch2, state_dim), jnp.float32)
    out2 = jax.block_until_ready(twinq_forward(action2, condition2, params))
    ref2 = twinq_reference(action2, condition2, params)
    assert out2.shape == (batch2, 1)
    assert jnp.allclose(out2, ref2, atol=1e-2, rtol=1e-2), "mismatch vs reference (batch=12)"

    print("KERNEL_OK")
</pallas_src>

<mosaic_0001>
module attributes {stable_mosaic.version = 11 : i64} {
  func.func @twinq_kernel(%arg0: i32, %arg1: memref<8x32xbf16, #tpu.memory_space<vmem>>, %arg2: memref<32x512xbf16, #tpu.memory_space<vmem>>, %arg3: memref<1x512xf32, #tpu.memory_space<vmem>>, %arg4: memref<256x256xbf16, #tpu.memory_space<vmem>>, %arg5: memref<1x256xf32, #tpu.memory_space<vmem>>, %arg6: memref<256x256xbf16, #tpu.memory_space<vmem>>, %arg7: memref<1x256xf32, #tpu.memory_space<vmem>>, %arg8: memref<512x128xbf16, #tpu.memory_space<vmem>>, %arg9: memref<1x2xf32, #tpu.memory_space<vmem>>, %arg10: memref<8x1xf32, #tpu.memory_space<vmem>>) attributes {dimension_semantics = [#tpu.dimension_semantics<parallel>], iteration_bounds = array<i64: 1>, scalar_prefetch = 0 : i64, scratch_operands = 0 : i64, tpu.core_type = #tpu.core_type<tc>, window_params = [{transform_indices = @transform_0, window_bounds = array<i64: 8, 32>}, {pipeline_mode = #tpu.pipeline_mode<synchronous>, transform_indices = @transform_1, window_bounds = array<i64: 32, 512>}, {pipeline_mode = #tpu.pipeline_mode<synchronous>, transform_indices = @transform_2, window_bounds = array<i64: 1, 512>}, {pipeline_mode = #tpu.pipeline_mode<synchronous>, transform_indices = @transform_3, window_bounds = array<i64: 256, 256>}, {pipeline_mode = #tpu.pipeline_mode<synchronous>, transform_indices = @transform_4, window_bounds = array<i64: 1, 256>}, {pipeline_mode = #tpu.pipeline_mode<synchronous>, transform_indices = @transform_5, window_bounds = array<i64: 256, 256>}, {pipeline_mode = #tpu.pipeline_mode<synchronous>, transform_indices = @transform_6, window_bounds = array<i64: 1, 256>}, {pipeline_mode = #tpu.pipeline_mode<synchronous>, transform_indices = @transform_7, window_bounds = array<i64: 512, 128>}, {pipeline_mode = #tpu.pipeline_mode<synchronous>, transform_indices = @transform_8, window_bounds = array<i64: 1, 2>}, {transform_indices = @transform_9, window_bounds = array<i64: 8, 1>}]} {
    %c0 = arith.constant 0 : index
    %c0_0 = arith.constant 0 : index
    %0 = vector.load %arg1[%c0, %c0_0] : memref<8x32xbf16, #tpu.memory_space<vmem>>, vector<8x32xbf16>
    %c0_1 = arith.constant 0 : index
    %c0_2 = arith.constant 0 : index
    %1 = vector.load %arg2[%c0_1, %c0_2] : memref<32x512xbf16, #tpu.memory_space<vmem>>, vector<32x512xbf16>
    %cst = arith.constant dense<0.000000e+00> : vector<8x512xf32>
    %2 = tpu.matmul %0, %1, %cst {dimension_numbers = #tpu.dot_dimension_numbers<[1], [0], [0], [1], [0, 0, 1, 1], [], []>} : vector<8x32xbf16>, vector<32x512xbf16>, vector<8x512xf32> -> vector<8x512xf32>
    %c0_3 = arith.constant 0 : index
    %c0_4 = arith.constant 0 : index
    %3 = vector.load %arg3[%c0_3, %c0_4] : memref<1x512xf32, #tpu.memory_space<vmem>>, vector<1x512xf32>
    %4 = vector.broadcast %3 : vector<1x512xf32> to vector<8x512xf32>
    %5 = arith.addf %2, %4 : vector<8x512xf32>
    %cst_5 = arith.constant 0.000000e+00 : f32
    %6 = vector.broadcast %cst_5 : f32 to vector<8x512xf32>
    %7 = arith.maximumf %5, %6 : vector<8x512xf32>
    %8 = arith.truncf %7 : vector<8x512xf32> to vector<8x512xbf16>
    %9 = vector.extract_strided_slice %8 {offsets = [0, 0], sizes = [8, 256], strides = [1, 1]} : vector<8x512xbf16> to vector<8x256xbf16>
    %c0_6 = arith.constant 0 : index
    %c0_7 = arith.constant 0 : index
    %10 = vector.load %arg4[%c0_6, %c0_7] : memref<256x256xbf16, #tpu.memory_space<vmem>>, vector<256x256xbf16>
    %cst_8 = arith.constant dense<0.000000e+00> : vector<8x256xf32>
    %11 = tpu.matmul %9, %10, %cst_8 {dimension_numbers = #tpu.dot_dimension_numbers<[1], [0], [0], [1], [0, 0, 1, 1], [], []>} : vector<8x256xbf16>, vector<256x256xbf16>, vector<8x256xf32> -> vector<8x256xf32>
    %c0_9 = arith.constant 0 : index
    %c0_10 = arith.constant 0 : index
    %12 = vector.load %arg5[%c0_9, %c0_10] : memref<1x256xf32, #tpu.memory_space<vmem>>, vector<1x256xf32>
    %13 = vector.broadcast %12 : vector<1x256xf32> to vector<8x256xf32>
    %14 = arith.addf %11, %13 : vector<8x256xf32>
    %15 = vector.extract_strided_slice %8 {offsets = [0, 256], sizes = [8, 256], strides = [1, 1]} : vector<8x512xbf16> to vector<8x256xbf16>
    %c0_11 = arith.constant 0 : index
    %c0_12 = arith.constant 0 : index
    %16 = vector.load %arg6[%c0_11, %c0_12] : memref<256x256xbf16, #tpu.memory_space<vmem>>, vector<256x256xbf16>
    %cst_13 = arith.constant dense<0.000000e+00> : vector<8x256xf32>
    %17 = tpu.matmul %15, %16, %cst_13 {dimension_numbers = #tpu.dot_dimension_numbers<[1], [0], [0], [1], [0, 0, 1, 1], [], []>} : vector<8x256xbf16>, vector<256x256xbf16>, vector<8x256xf32> -> vector<8x256xf32>
    %c0_14 = arith.constant 0 : index
    %c0_15 = arith.constant 0 : index
    %18 = vector.load %arg7[%c0_14, %c0_15] : memref<1x256xf32, #tpu.memory_space<vmem>>, vector<1x256xf32>
    %19 = vector.broadcast %18 : vector<1x256xf32> to vector<8x256xf32>
    %20 = arith.addf %17, %19 : vector<8x256xf32>
    %cst_16 = arith.constant 0.000000e+00 : f32
    %21 = vector.broadcast %cst_16 : f32 to vector<8x256xf32>
    %22 = arith.maximumf %14, %21 : vector<8x256xf32>
    %23 = arith.truncf %22 : vector<8x256xf32> to vector<8x256xbf16>
    %cst_17 = arith.constant 0.000000e+00 : f32
    %24 = vector.broadcast %cst_17 : f32 to vector<8x256xf32>
    %25 = arith.maximumf %20, %24 : vector<8x256xf32>
    %26 = arith.truncf %25 : vector<8x256xf32> to vector<8x256xbf16>
    %27 = tpu.concatenate %23, %26 in 1 : vector<8x256xbf16>, vector<8x256xbf16> -> vector<8x512xbf16>
    %c0_18 = arith.constant 0 : index
    %c0_19 = arith.constant 0 : index
    %28 = vector.load %arg8[%c0_18, %c0_19] : memref<512x128xbf16, #tpu.memory_space<vmem>>, vector<512x128xbf16>
    %cst_20 = arith.constant dense<0.000000e+00> : vector<8x128xf32>
    %29 = tpu.matmul %27, %28, %cst_20 {dimension_numbers = #tpu.dot_dimension_numbers<[1], [0], [0], [1], [0, 0, 1, 1], [], []>} : vector<8x512xbf16>, vector<512x128xbf16>, vector<8x128xf32> -> vector<8x128xf32>
    %30 = vector.extract_strided_slice %29 {offsets = [0, 0], sizes = [8, 2], strides = [1, 1]} : vector<8x128xf32> to vector<8x2xf32>
    %c0_21 = arith.constant 0 : index
    %c0_22 = arith.constant 0 : index
    %31 = vector.load %arg9[%c0_21, %c0_22] : memref<1x2xf32, #tpu.memory_space<vmem>>, vector<1x2xf32>
    %32 = vector.broadcast %31 : vector<1x2xf32> to vector<8x2xf32>
    %33 = arith.addf %30, %32 : vector<8x2xf32>
    %cst_23 = arith.constant dense<0x7F800000> : vector<8xf32>
    %34 = vector.multi_reduction <minimumf>, %33, %cst_23 [1] : vector<8x2xf32> to vector<8xf32>
    %35 = vector.shape_cast %34 : vector<8xf32> to vector<8x1xf32>
    %c0_24 = arith.constant 0 : index
    %c0_25 = arith.constant 0 : index
    %36 = vector.load %arg10[%c0_24, %c0_25] : memref<8x1xf32, #tpu.memory_space<vmem>>, vector<8x1xf32>
    tpu.vector_store %arg10[%c0_24, %c0_25], %35 {strides = array<i32>} : memref<8x1xf32, #tpu.memory_space<vmem>>, vector<8x1xf32>,
    return
  }
  func.func @transform_0(%arg0: i32) -> (i32, i32) {
    %c0_i32 = arith.constant 0 : i32
    %c0_i32_0 = arith.constant 0 : i32
    return %arg0, %c0_i32 : i32, i32
  }
  func.func @transform_1(%arg0: i32) -> (i32, i32) {
    %c0_i32 = arith.constant 0 : i32
    %c0_i32_0 = arith.constant 0 : i32
    %c0_i32_1 = arith.constant 0 : i32
    return %c0_i32, %c0_i32_0 : i32, i32
  }
  func.func @transform_2(%arg0: i32) -> (i32, i32) {
    %c0_i32 = arith.constant 0 : i32
    %c0_i32_0 = arith.constant 0 : i32
    %c0_i32_1 = arith.constant 0 : i32
    return %c0_i32, %c0_i32_0 : i32, i32
  }
  func.func @transform_3(%arg0: i32) -> (i32, i32) {
    %c0_i32 = arith.constant 0 : i32
    %c0_i32_0 = arith.constant 0 : i32
    %c0_i32_1 = arith.constant 0 : i32
    return %c0_i32, %c0_i32_0 : i32, i32
  }
  func.func @transform_4(%arg0: i32) -> (i32, i32) {
    %c0_i32 = arith.constant 0 : i32
    %c0_i32_0 = arith.constant 0 : i32
    %c0_i32_1 = arith.constant 0 : i32
    return %c0_i32, %c0_i32_0 : i32, i32
  }
  func.func @transform_5(%arg0: i32) -> (i32, i32) {
    %c0_i32 = arith.constant 0 : i32
    %c0_i32_0 = arith.constant 0 : i32
    %c0_i32_1 = arith.constant 0 : i32
    return %c0_i32, %c0_i32_0 : i32, i32
  }
  func.func @transform_6(%arg0: i32) -> (i32, i32) {
    %c0_i32 = arith.constant 0 : i32
    %c0_i32_0 = arith.constant 0 : i32
    %c0_i32_1 = arith.constant 0 : i32
    return %c0_i32, %c0_i32_0 : i32, i32
  }
  func.func @transform_7(%arg0: i32) -> (i32, i32) {
    %c0_i32 = arith.constant 0 : i32
    %c0_i32_0 = arith.constant 0 : i32
    %c0_i32_1 = arith.constant 0 : i32
    return %c0_i32, %c0_i32_0 : i32, i32
  }
  func.func @transform_8(%arg0: i32) -> (i32, i32) {
    %c0_i32 = arith.constant 0 : i32
    %c0_i32_0 = arith.constant 0 : i32
    %c0_i32_1 = arith.constant 0 : i32
    return %c0_i32, %c0_i32_0 : i32, i32
  }
  func.func @transform_9(%arg0: i32) -> (i32, i32) {
    %c0_i32 = arith.constant 0 : i32
    %c0_i32_0 = arith.constant 0 : i32
    return %arg0, %c0_i32 : i32, i32
  }
}

</mosaic_0001>

<llo_original>
// kernel: tpu_custom_call.1
$region0: #{tpu_custom_call.1}
  #allocation0 [shape = 'u32[]', space=smem, size = 0x4, offset = 0x4, fixed_abs, tag = 'smem constant byte address 0x4 - core index']
  #allocation1 [shape = 'u32[144,128]{1,0:T(1,128)}', space=vmem, size = 0x12000, scoped, tag = 'internal scratch']
  %s0 = inlined_call_operand.hbm [shape: bf16[8,32], index: 0, kind: input, shape index: {}]
  %s1 = inlined_call_operand.hbm [shape: bf16[32,512], index: 1, kind: input, shape index: {}]
  %s2 = inlined_call_operand.hbm [shape: f32[1,512], index: 2, kind: input, shape index: {}]
  %s3 = inlined_call_operand.hbm [shape: bf16[256,256], index: 3, kind: input, shape index: {}]
  %s4 = inlined_call_operand.vmem [shape: f32[1,256], index: 4, kind: input, shape index: {}]
  %s5 = inlined_call_operand.hbm [shape: bf16[256,256], index: 5, kind: input, shape index: {}]
  %s6 = inlined_call_operand.vmem [shape: f32[1,256], index: 6, kind: input, shape index: {}]
  %s7 = inlined_call_operand.hbm [shape: bf16[512,128], index: 7, kind: input, shape index: {}]
  %s8 = inlined_call_operand.vmem [shape: f32[1,2], index: 8, kind: input, shape index: {}]
  %s9 = inlined_call_operand.vmem [shape: f32[8,1], index: 9, kind: output, shape index: {}]
  %s10 = sld [smem:[#allocation0]]
  $region70: #{tpu_custom_call.1} parent=0
    _
  %s12 = ssub.s32 1, %s10
  %s13 = scalar_select 0, %s12, %s10
  $region1: #{tpu_custom_call.1} parent=0
    #allocation2 [shape = 'u8[2048]{0}', space=vmem, size = 0x800, scoped, tag = 'input window, operand 0, single buffered']
    #allocation3 [shape = 's32[1]{0}', space=sflag, size = 0x4, scoped, tag = 'scoped memory for tpu_custom_call.1']
    #allocation4 [shape = 'u8[32768]{0}', space=vmem, size = 0x8000, scoped, tag = 'input window, operand 1, single buffered']
    #allocation5 [shape = 's32[1]{0}', space=sflag, size = 0x4, scoped, tag = 'scoped memory for tpu_custom_call.1']
    #allocation6 [shape = 'u8[2048]{0}', space=vmem, size = 0x800, scoped, tag = 'input window, operand 2, single buffered']
    #allocation7 [shape = 'u8[131072]{0}', space=vmem, size = 0x20000, scoped, tag = 'input window, operand 3, single buffered']
    #allocation8 [shape = 's32[1]{0}', space=sflag, size = 0x4, scoped, tag = 'scoped memory for tpu_custom_call.1']
    #allocation9 [shape = 'u8[131072]{0}', space=vmem, size = 0x20000, scoped, tag = 'input window, operand 5, single buffered']
    #allocation10 [shape = 'u8[131072]{0}', space=vmem, size = 0x20000, scoped, tag = 'input window, operand 7, single buffered']
    #allocation11 [shape = 's32[1]{0}', space=sflag, size = 0x4, scoped, tag = 'scoped memory for tpu_custom_call.1']
    %14 = vsyncpa [#allocation3], 0
    %15 = vsyncpa [#allocation5], 0
    %16 = vsyncpa [#allocation8], 0
    %17 = vsyncpa [#allocation11], 0
    // Predicated region
    $region2: #{tpu_custom_call.1} parent=1 // pred_check
      _
    $region3: #{tpu_custom_call.1} parent=1 // pred_check_branch
      %19 = sbr.rel (0) target = $region5
    $region4: #{tpu_custom_call.1} parent=1 // pred_region
      %s21 = ssub.s32 64, 64
      %22 = vsyncadd [#allocation3], %s21
      %s24 = sshll.u32 [#allocation2], 4
      %s25 = int_to_ptr.vmem [resolvable:$true] %s24
      %27 = dma.hbm_to_vmem [thread:$0]  %s0, 64, %s25, [#allocation3]
    $region5: #{tpu_custom_call.1} parent=1 // pred_fallthru
      _
    // Predicated region
    $region6: #{tpu_custom_call.1} parent=1 // pred_check
      _
    $region7: #{tpu_custom_call.1} parent=1 // pred_check_branch
      %29 = sbr.rel (0) target = $region9
    $region8: #{tpu_custom_call.1} parent=1 // pred_region
      %s31 = ssub.s32 1024, 1024
      %32 = vsyncadd [#allocation5], %s31
      %s33 = sshll.u32 [#allocation4], 4
      %s34 = int_to_ptr.vmem [resolvable:$true] %s33
      %39 = dma.hbm_to_vmem [thread:$0]  %s1, 1024, %s34, [#allocation5], 256, 256, 16
    $region9: #{tpu_custom_call.1} parent=1 // pred_fallthru
      _
    // Predicated region
    $region10: #{tpu_custom_call.1} parent=1 // pred_check
      _
    $region11: #{tpu_custom_call.1} parent=1 // pred_check_branch
      %41 = sbr.rel (0) target = $region13
    $region12: #{tpu_custom_call.1} parent=1 // pred_region
      %s43 = ssub.s32 64, 64
      %44 = vsyncadd [#allocation5], %s43
      %s46 = sshll.u32 [#allocation6], 4
      %s47 = int_to_ptr.vmem [resolvable:$true] %s46
      %49 = dma.hbm_to_vmem [thread:$0]  %s2, 64, %s47, [#allocation5]
    $region13: #{tpu_custom_call.1} parent=1 // pred_fallthru
      _
    // Predicated region
    $region14: #{tpu_custom_call.1} parent=1 // pred_check
      _
    $region15: #{tpu_custom_call.1} parent=1 // pred_check_branch
      %51 = sbr.rel (0) target = $region17
    $region16: #{tpu_custom_call.1} parent=1 // pred_region
      %s53 = ssub.s32 4096, 4096
      %54 = vsyncadd [#allocation8], %s53
      %s55 = sshll.u32 [#allocation7], 4
      %s56 = int_to_ptr.vmem [resolvable:$true] %s55
      %61 = dma.hbm_to_vmem [thread:$0]  %s3, 4096, %s56, [#allocation8], 128, 128, 8
    $region17: #{tpu_custom_call.1} parent=1 // pred_fallthru
      _
    // Predicated region
    $region18: #{tpu_custom_call.1} parent=1 // pred_check
      _
    $region19: #{tpu_custom_call.1} parent=1 // pred_check_branch
      %63 = sbr.rel (0) target = $region21
    $region20: #{tpu_custom_call.1} parent=1 // pred_region
      _
    $region21: #{tpu_custom_call.1} parent=1 // pred_fallthru
      _
    // Predicated region
    $region22: #{tpu_custom_call.1} parent=1 // pred_check
      _
    $region23: #{tpu_custom_call.1} parent=1 // pred_check_branch
      %65 = sbr.rel (0) target = $region25
    $region24: #{tpu_custom_call.1} parent=1 // pred_region
      %s67 = ssub.s32 4096, 4096
      %68 = vsyncadd [#allocation8], %s67
      %s69 = sshll.u32 [#allocation9], 4
      %s70 = int_to_ptr.vmem [resolvable:$true] %s69
      %75 = dma.hbm_to_vmem [thread:$0]  %s5, 4096, %s70, [#allocation8], 128, 128, 8
    $region25: #{tpu_custom_call.1} parent=1 // pred_fallthru
      _
    // Predicated region
    $region26: #{tpu_custom_call.1} parent=1 // pred_check
      _
    $region27: #{tpu_custom_call.1} parent=1 // pred_check_branch
      %77 = sbr.rel (0) target = $region29
    $region28: #{tpu_custom_call.1} parent=1 // pred_region
      _
    $region29: #{tpu_custom_call.1} parent=1 // pred_fallthru
      _
    // Predicated region
    $region30: #{tpu_custom_call.1} parent=1 // pred_check
      _
    $region31: #{tpu_custom_call.1} parent=1 // pred_check_branch
      %79 = sbr.rel (0) target = $region33
    $region32: #{tpu_custom_call.1} parent=1 // pred_region
      %s81 = ssub.s32 4096, 4096
      %82 = vsyncadd [#allocation11], %s81
      %s83 = sshll.u32 [#allocation10], 4
      %s84 = int_to_ptr.vmem [resolvable:$true] %s83
      %89 = dma.hbm_to_vmem [thread:$0]  %s7, 4096, %s84, [#allocation11], 64, 64, 4
    $region33: #{tpu_custom_call.1} parent=1 // pred_fallthru
      _
    // Predicated region
    $region34: #{tpu_custom_call.1} parent=1 // pred_check
      _
    $region35: #{tpu_custom_call.1} parent=1 // pred_check_branch
      %91 = sbr.rel (0) target = $region37
    $region36: #{tpu_custom_call.1} parent=1 // pred_region
      _
    $region37: #{tpu_custom_call.1} parent=1 // pred_fallthru
      _
    // Predicated region
    $region38: #{tpu_custom_call.1} parent=1 // pred_check
      _
    $region39: #{tpu_custom_call.1} parent=1 // pred_check_branch
      %93 = sbr.rel (0) target = $region41
    $region40: #{tpu_custom_call.1} parent=1 // pred_region
      %94 = dma.done [#allocation3], 64
    $region41: #{tpu_custom_call.1} parent=1 // pred_fallthru
      _
    // Predicated region
    $region42: #{tpu_custom_call.1} parent=1 // pred_check
      _
    $region43: #{tpu_custom_call.1} parent=1 // pred_check_branch
      %96 = sbr.rel (0) target = $region45
    $region44: #{tpu_custom_call.1} parent=1 // pred_region
      %97 = dma.done [#allocation5], 1024
    $region45: #{tpu_custom_call.1} parent=1 // pred_fallthru
      _
    // Predicated region
    $region46: #{tpu_custom_call.1} parent=1 // pred_check
      _
    $region47: #{tpu_custom_call.1} parent=1 // pred_check_branch
      %99 = sbr.rel (0) target = $region49
    $region48: #{tpu_custom_call.1} parent=1 // pred_region
      %100 = dma.done [#allocation5], 64
    $region49: #{tpu_custom_call.1} parent=1 // pred_fallthru
      _
    // Predicated region
    $region50: #{tpu_custom_call.1} parent=1 // pred_check
      _
    $region51: #{tpu_custom_call.1} parent=1 // pred_check_branch
      %102 = sbr.rel (0) target = $region53
    $region52: #{tpu_custom_call.1} parent=1 // pred_region
      %103 = dma.done [#allocation8], 4096
    $region53: #{tpu_custom_call.1} parent=1 // pred_fallthru
      _
    // Predicated region
    $region54: #{tpu_custom_call.1} parent=1 // pred_check
      _
    $region55: #{tpu_custom_call.1} parent=1 // pred_check_branch
      %105 = sbr.rel (0) target = $region57
    $region56: #{tpu_custom_call.1} parent=1 // pred_region
      %106 = dma.done [#allocation8], 4096
    $region57: #{tpu_custom_call.1} parent=1 // pred_fallthru
      _
    // Predicated region
    $region58: #{tpu_custom_call.1} parent=1 // pred_check
      _
    $region59: #{tpu_custom_call.1} parent=1 // pred_check_branch
      %108 = sbr.rel (0) target = $region61
    $region60: #{tpu_custom_call.1} parent=1 // pred_region
      %109 = dma.done [#allocation11], 4096
    $region61: #{tpu_custom_call.1} parent=1 // pred_fallthru
      _
    %v111 = vld [vmem:[#allocation2] sm:$0xf]
    %v112 = vld [vmem:[#allocation4] sm:$0xff]
    %v113 = vld [vmem:[#allocation4 + $0x8] sm:$0xff]
    %v114 = vld [vmem:[#allocation4 + $0x10] sm:$0xff]
    %v115 = vld [vmem:[#allocation4 + $0x18] sm:$0xff]
    %v116 = vld [vmem:[#allocation4 + $0x20] sm:$0xff]
    %v117 = vld [vmem:[#allocation4 + $0x28] sm:$0xff]
    %v118 = vld [vmem:[#allocation4 + $0x30] sm:$0xff]
    %v119 = vld [vmem:[#allocation4 + $0x38] sm:$0xff]
    %v120 = vld [vmem:[#allocation6] sm:$0xf]
    %v122 = vlaneseq
    %v123 = vshrl.u32 %v122, 7
    %v124 = vsub.s32 0, %v123
    %v125 = vrot.slane %v120, %v124
    %v126 = vlaneseq
    %v127 = vshrl.u32 %v126, 7
    %v128 = vsub.s32 1, %v127
    %v129 = vrot.slane %v120, %v128
    %v130 = vlaneseq
    %v131 = vshrl.u32 %v130, 7
    %v132 = vsub.s32 2, %v131
    %v133 = vrot.slane %v120, %v132
    %v134 = vlaneseq
    %v135 = vshrl.u32 %v134, 7
    %v136 = vsub.s32 3, %v135
    %v137 = vrot.slane %v120, %v136
    %v150 = vunpack.c.l.b16 %v112
    %v151 = vunpack.c.h.b16 %v112
    %v152 = vunpack.c.l.b16 %v113
    %v153 = vunpack.c.h.b16 %v113
    %v154 = vunpack.c.l.b16 %v114
    %v155 = vunpack.c.h.b16 %v114
    %v156 = vunpack.c.l.b16 %v115
    %v157 = vunpack.c.h.b16 %v115
    %v158 = vunpack.c.l.b16 %v116
    %v159 = vunpack.c.h.b16 %v116
    %v160 = vunpack.c.l.b16 %v117
    %v161 = vunpack.c.h.b16 %v117
    %v162 = vunpack.c.l.b16 %v118
    %v163 = vunpack.c.h.b16 %v118
    %v164 = vunpack.c.l.b16 %v119
    %v165 = vunpack.c.h.b16 %v119
    %v166 = vpack.c.b16 %v154, %v150
    %v167 = vpack.c.b16 %v155, %v151
    %v168 = vpack.c.b16 %v156, %v152
    %v169 = vpack.c.b16 %v157, %v153
    %v170 = vpack.c.b16 %v162, %v158
    %v171 = vpack.c.b16 %v163, %v159
    %v172 = vpack.c.b16 %v164, %v160
    %v173 = vpack.c.b16 %v165, %v161
    %vm182 = vcmask 261120
    %v184 = vsel %vm182, %v111, 0
    %186 = vmatprep.subr.bf16.mxu0 0
    %187 = vmatpush1.bf16.msra.mxu0 0
    %188 = vmatprep.subr.bf16.mxu0 0
    %189 = vmatpush1.bf16.msra.mxu0 0
    %190 = vmatprep.subr.bf16.mxu0 0
    %191 = vmatpush1.bf16.msra.mxu0 0
    %192 = vmatprep.subr.bf16.mxu0 0
    %193 = vmatpush1.bf16.msra.mxu0 0
    %194 = vmatprep.subr.bf16.mxu0 0
    %195 = vmatpush1.bf16.msra.mxu0 0
    %196 = vmatprep.subr.bf16.mxu0 0
    %197 = vmatpush1.bf16.msra.mxu0 0
    %198 = vmatprep.subr.bf16.mxu0 %v171
    %199 = vmatpush1.bf16.msra.mxu0 %v170
    %200 = vmatprep.subr.bf16.mxu0 %v167
    %201 = vmatpush1.bf16.msra.mxu0 %v166
    %202 = vmatprep.subr.bf16.mxu0 0
    %203 = vmatpush2.bf16.msra.mxu0 0
    %204 = vmatprep.subr.bf16.mxu0 0
    %205 = vmatpush2.bf16.msra.mxu0 0
    %206 = vmatprep.subr.bf16.mxu0 0
    %207 = vmatpush2.bf16.msra.mxu0 0
    %208 = vmatprep.subr.bf16.mxu0 0
    %209 = vmatpush2.bf16.msra.mxu0 0
    %210 = vmatprep.subr.bf16.mxu0 0
    %211 = vmatpush2.bf16.msra.mxu0 0
    %212 = vmatprep.subr.bf16.mxu0 0
    %213 = vmatpush2.bf16.msra.mxu0 0
    %214 = vmatprep.subr.bf16.mxu0 0
    %215 = vmatpush2.bf16.msra.mxu0 0
    %216 = vmatprep.subr.bf16.mxu0 0
    %217 = vmatpush2.bf16.msra.mxu0 0
    %218 = vmatprep.mubr.bf16.mxu0 0
    %219 = vmatmul.mubr.bf16.gmra.mxu0 %v184
    %v220 = vpop.f32.mrf.mxu0
    %v221 = vadd.f32 %v125, %v220
    %v222 = vpop.f32.mrf.mxu0
    %v223 = vadd.f32 %v129, %v222
    %v224 = vpop.f32.mrf.mxu0
    %v225 = vpop.f32.mrf.mxu0
    %226 = vdwg.mxu0
    %227 = vmatprep.subr.bf16.mxu0 0
    %228 = vmatpush1.bf16.msra.mxu0 0
    %229 = vmatprep.subr.bf16.mxu0 0
    %230 = vmatpush1.bf16.msra.mxu0 0
    %231 = vmatprep.subr.bf16.mxu0 0
    %232 = vmatpush1.bf16.msra.mxu0 0
    %233 = vmatprep.subr.bf16.mxu0 0
    %234 = vmatpush1.bf16.msra.mxu0 0
    %235 = vmatprep.subr.bf16.mxu0 0
    %236 = vmatpush1.bf16.msra.mxu0 0
    %237 = vmatprep.subr.bf16.mxu0 0
    %238 = vmatpush1.bf16.msra.mxu0 0
    %239 = vmatprep.subr.bf16.mxu0 %v173
    %240 = vmatpush1.bf16.msra.mxu0 %v172
    %241 = vmatprep.subr.bf16.mxu0 %v169
    %242 = vmatpush1.bf16.msra.mxu0 %v168
    %243 = vmatprep.subr.bf16.mxu0 0
    %244 = vmatpush2.bf16.msra.mxu0 0
    %245 = vmatprep.subr.bf16.mxu0 0
    %246 = vmatpush2.bf16.msra.mxu0 0
    %247 = vmatprep.subr.bf16.mxu0 0
    %248 = vmatpush2.bf16.msra.mxu0 0
    %249 = vmatprep.subr.bf16.mxu0 0
    %250 = vmatpush2.bf16.msra.mxu0 0
    %251 = vmatprep.subr.bf16.mxu0 0
    %252 = vmatpush2.bf16.msra.mxu0 0
    %253 = vmatprep.subr.bf16.mxu0 0
    %254 = vmatpush2.bf16.msra.mxu0 0
    %255 = vmatprep.subr.bf16.mxu0 0
    %256 = vmatpush2.bf16.msra.mxu0 0
    %257 = vmatprep.subr.bf16.mxu0 0
    %258 = vmatpush2.bf16.msra.mxu0 0
    %259 = vmatprep.mubr.bf16.mxu0 0
    %260 = vmatmul.mubr.bf16.gmra.mxu0 %v184
    %v261 = vpop.f32.mrf.mxu0
    %v262 = vadd.f32 %v133, %v261
    %v263 = vpop.f32.mrf.mxu0
    %v264 = vadd.f32 %v137, %v263
    %v265 = vpop.f32.mrf.mxu0
    %v266 = vpop.f32.mrf.mxu0
    %267 = vdwg.mxu0
    %v268 = vmax.f32 %v221, 0.0
    %v269 = vmax.f32 %v223, 0.0
    %v270 = vmax.f32 %v262, 0.0
    %v271 = vmax.f32 %v264, 0.0
    %v272 = vpack.c.bf16 %v268, %v268
    %v273 = vpack.c.bf16 %v269, %v269
    %v274 = vpack.c.bf16 %v270, %v270
    %v275 = vpack.c.bf16 %v271, %v271
    %v276 = vld [vmem:[#allocation7] sm:$0xff]
    %v277 = vld [vmem:[#allocation7 + $0x8] sm:$0xff]
    %v278 = vld [vmem:[#allocation7 + $0x10] sm:$0xff]
    %v279 = vld [vmem:[#allocation7 + $0x18] sm:$0xff]
    %v280 = vld [vmem:[#allocation7 + $0x20] sm:$0xff]
    %v281 = vld [vmem:[#allocation7 + $0x28] sm:$0xff]
    %v282 = vld [vmem:[#allocation7 + $0x30] sm:$0xff]
    %v283 = vld [vmem:[#allocation7 + $0x38] sm:$0xff]
    %v284 = vld [vmem:[#allocation7 + $0x40] sm:$0xff]
    %v285 = vld [vmem:[#allocation7 + $0x48] sm:$0xff]
    %v286 = vld [vmem:[#allocation7 + $0x50] sm:$0xff]
    %v287 = vld [vmem:[#allocation7 + $0x58] sm:$0xff]
    %v288 = vld [vmem:[#allocation7 + $0x60] sm:$0xff]
    %v289 = vld [vmem:[#allocation7 + $0x68] sm:$0xff]
    %v290 = vld [vmem:[#allocation7 + $0x70] sm:$0xff]
    %v291 = vld [vmem:[#allocation7 + $0x78] sm:$0xff]
    %v292 = vld [vmem:[#allocation7 + $0x80] sm:$0xff]
    %v293 = vld [vmem:[#allocation7 + $0x88] sm:$0xff]
    %v294 = vld [vmem:[#allocation7 + $0x90] sm:$0xff]
    %v295 = vld [vmem:[#allocation7 + $0x98] sm:$0xff]
    %v296 = vld [vmem:[#allocation7 + $0xa0] sm:$0xff]
    %v297 = vld [vmem:[#allocation7 + $0xa8] sm:$0xff]
    %v298 = vld [vmem:[#allocation7 + $0xb0] sm:$0xff]
    %v299 = vld [vmem:[#allocation7 + $0xb8] sm:$0xff]
    %v300 = vld [vmem:[#allocation7 + $0xc0] sm:$0xff]
    %v301 = vld [vmem:[#allocation7 + $0xc8] sm:$0xff]
    %v302 = vld [vmem:[#allocation7 + $0xd0] sm:$0xff]
    %v303 = vld [vmem:[#allocation7 + $0xd8] sm:$0xff]
    %v304 = vld [vmem:[#allocation7 + $0xe0] sm:$0xff]
    %v305 = vld [vmem:[#allocation7 + $0xe8] sm:$0xff]
    %v306 = vld [vmem:[#allocation7 + $0xf0] sm:$0xff]
    %v307 = vld [vmem:[#allocation7 + $0xf8] sm:$0xff]
    %v308 = vld [vmem:[%s4] sm:$0x3]
    %v310 = vlaneseq
    %v311 = vshrl.u32 %v310, 7
    %v312 = vsub.s32 0, %v311
    %v313 = vrot.slane %v308, %v312
    %v314 = vlaneseq
    %v315 = vshrl.u32 %v314, 7
    %v316 = vsub.s32 1, %v315
    %v317 = vrot.slane %v308, %v316
    %v352 = vunpack.c.l.b16 %v276
    %v353 = vunpack.c.h.b16 %v276
    %v354 = vunpack.c.l.b16 %v277
    %v355 = vunpack.c.h.b16 %v277
    %v356 = vunpack.c.l.b16 %v278
    %v357 = vunpack.c.h.b16 %v278
    %v358 = vunpack.c.l.b16 %v279
    %v359 = vunpack.c.h.b16 %v279
    %v360 = vunpack.c.l.b16 %v280
    %v361 = vunpack.c.h.b16 %v280
    %v362 = vunpack.c.l.b16 %v281
    %v363 = vunpack.c.h.b16 %v281
    %v364 = vunpack.c.l.b16 %v282
    %v365 = vunpack.c.h.b16 %v282
    %v366 = vunpack.c.l.b16 %v283
    %v367 = vunpack.c.h.b16 %v283
    %v368 = vunpack.c.l.b16 %v284
    %v369 = vunpack.c.h.b16 %v284
    %v370 = vunpack.c.l.b16 %v285
    %v371 = vunpack.c.h.b16 %v285
    %v372 = vunpack.c.l.b16 %v286
    %v373 = vunpack.c.h.b16 %v286
    %v374 = vunpack.c.l.b16 %v287
    %v375 = vunpack.c.h.b16 %v287
    %v376 = vunpack.c.l.b16 %v288
    %v377 = vunpack.c.h.b16 %v288
    %v378 = vunpack.c.l.b16 %v289
    %v379 = vunpack.c.h.b16 %v289
    %v380 = vunpack.c.l.b16 %v290
    %v381 = vunpack.c.h.b16 %v290
    %v382 = vunpack.c.l.b16 %v291
    %v383 = vunpack.c.h.b16 %v291
    %v384 = vunpack.c.l.b16 %v292
    %v385 = vunpack.c.h.b16 %v292
    %v386 = vunpack.c.l.b16 %v293
    %v387 = vunpack.c.h.b16 %v293
    %v388 = vunpack.c.l.b16 %v294
    %v389 = vunpack.c.h.b16 %v294
    %v390 = vunpack.c.l.b16 %v295
    %v391 = vunpack.c.h.b16 %v295
    %v392 = vunpack.c.l.b16 %v296
    %v393 = vunpack.c.h.b16 %v296
    %v394 = vunpack.c.l.b16 %v297
    %v395 = vunpack.c.h.b16 %v297
    %v396 = vunpack.c.l.b16 %v298
    %v397 = vunpack.c.h.b16 %v298
    %v398 = vunpack.c.l.b16 %v299
    %v399 = vunpack.c.h.b16 %v299
    %v400 = vunpack.c.l.b16 %v300
    %v401 = vunpack.c.h.b16 %v300
    %v402 = vunpack.c.l.b16 %v301
    %v403 = vunpack.c.h.b16 %v301
    %v404 = vunpack.c.l.b16 %v302
    %v405 = vunpack.c.h.b16 %v302
    %v406 = vunpack.c.l.b16 %v303
    %v407 = vunpack.c.h.b16 %v303
    %v408 = vunpack.c.l.b16 %v304
    %v409 = vunpack.c.h.b16 %v304
    %v410 = vunpack.c.l.b16 %v305
    %v411 = vunpack.c.h.b16 %v305
    %v412 = vunpack.c.l.b16 %v306
    %v413 = vunpack.c.h.b16 %v306
    %v414 = vunpack.c.l.b16 %v307
    %v415 = vunpack.c.h.b16 %v307
    %v416 = vpack.c.b16 %v354, %v352
    %v417 = vpack.c.b16 %v355, %v353
    %v418 = vpack.c.b16 %v358, %v356
    %v419 = vpack.c.b16 %v359, %v357
    %v420 = vpack.c.b16 %v362, %v360
    %v421 = vpack.c.b16 %v363, %v361
    %v422 = vpack.c.b16 %v366, %v364
    %v423 = vpack.c.b16 %v367, %v365
    %v424 = vpack.c.b16 %v370, %v368
    %v425 = vpack.c.b16 %v371, %v369
    %v426 = vpack.c.b16 %v374, %v372
    %v427 = vpack.c.b16 %v375, %v373
    %v428 = vpack.c.b16 %v378, %v376
    %v429 = vpack.c.b16 %v379, %v377
    %v430 = vpack.c.b16 %v382, %v380
    %v431 = vpack.c.b16 %v383, %v381
    %v432 = vpack.c.b16 %v386, %v384
    %v433 = vpack.c.b16 %v387, %v385
    %v434 = vpack.c.b16 %v390, %v388
    %v435 = vpack.c.b16 %v391, %v389
    %v436 = vpack.c.b16 %v394, %v392
    %v437 = vpack.c.b16 %v395, %v393
    %v438 = vpack.c.b16 %v398, %v396
    %v439 = vpack.c.b16 %v399, %v397
    %v440 = vpack.c.b16 %v402, %v400
    %v441 = vpack.c.b16 %v403, %v401
    %v442 = vpack.c.b16 %v406, %v404
    %v443 = vpack.c.b16 %v407, %v405
    %v444 = vpack.c.b16 %v410, %v408
    %v445 = vpack.c.b16 %v411, %v409
    %v446 = vpack.c.b16 %v414, %v412
    %v447 = vpack.c.b16 %v415, %v413
    %480 = vmatprep.subr.bf16.mxu0 %v431
    %481 = vmatpush1.bf16.msra.mxu0 %v430
    %482 = vmatprep.subr.bf16.mxu0 %v429
    %483 = vmatpush1.bf16.msra.mxu0 %v428
    %484 = vmatprep.subr.bf16.mxu0 %v427
    %485 = vmatpush1.bf16.msra.mxu0 %v426
    %486 = vmatprep.subr.bf16.mxu0 %v425
    %487 = vmatpush1.bf16.msra.mxu0 %v424
    %488 = vmatprep.subr.bf16.mxu0 %v423
    %489 = vmatpush1.bf16.msra.mxu0 %v422
    %490 = vmatprep.subr.bf16.mxu0 %v421
    %491 = vmatpush1.bf16.msra.mxu0 %v420
    %492 = vmatprep.subr.bf16.mxu0 %v419
    %493 = vmatpush1.bf16.msra.mxu0 %v418
    %494 = vmatprep.subr.bf16.mxu0 %v417
    %495 = vmatpush1.bf16.msra.mxu0 %v416
    %496 = vmatprep.subr.bf16.mxu0 %v447
    %497 = vmatpush2.bf16.msra.mxu0 %v446
    %498 = vmatprep.subr.bf16.mxu0 %v445
    %499 = vmatpush2.bf16.msra.mxu0 %v444
    %500 = vmatprep.subr.bf16.mxu0 %v443
    %501 = vmatpush2.bf16.msra.mxu0 %v442
    %502 = vmatprep.subr.bf16.mxu0 %v441
    %503 = vmatpush2.bf16.msra.mxu0 %v440
    %504 = vmatprep.subr.bf16.mxu0 %v439
    %505 = vmatpush2.bf16.msra.mxu0 %v438
    %506 = vmatprep.subr.bf16.mxu0 %v437
    %507 = vmatpush2.bf16.msra.mxu0 %v436
    %508 = vmatprep.subr.bf16.mxu0 %v435
    %509 = vmatpush2.bf16.msra.mxu0 %v434
    %510 = vmatprep.subr.bf16.mxu0 %v433
    %511 = vmatpush2.bf16.msra.mxu0 %v432
    %512 = vmatprep.mubr.bf16.mxu0 %v273
    %513 = vmatmul.mubr.bf16.gmra.mxu0 %v272
    %v514 = vpop.f32.mrf.mxu0
    %v515 = vadd.f32 %v313, %v514
    %v516 = vpop.f32.mrf.mxu0
    %v517 = vadd.f32 %v317, %v516
    %v518 = vpop.f32.mrf.mxu0
    %v519 = vpop.f32.mrf.mxu0
    %520 = vdwg.mxu0
    %v521 = vld [vmem:[#allocation9] sm:$0xff]
    %v522 = vld [vmem:[#allocation9 + $0x8] sm:$0xff]
    %v523 = vld [vmem:[#allocation9 + $0x10] sm:$0xff]
    %v524 = vld [vmem:[#allocation9 + $0x18] sm:$0xff]
    %v525 = vld [vmem:[#allocation9 + $0x20] sm:$0xff]
    %v526 = vld [vmem:[#allocation9 + $0x28] sm:$0xff]
    %v527 = vld [vmem:[#allocation9 + $0x30] sm:$0xff]
    %v528 = vld [vmem:[#allocation9 + $0x38] sm:$0xff]
    %v529 = vld [vmem:[#allocation9 + $0x40] sm:$0xff]
    %v530 = vld [vmem:[#allocation9 + $0x48] sm:$0xff]
    %v531 = vld [vmem:[#allocation9 + $0x50] sm:$0xff]
    %v532 = vld [vmem:[#allocation9 + $0x58] sm:$0xff]
    %v533 = vld [vmem:[#allocation9 + $0x60] sm:$0xff]
    %v534 = vld [vmem:[#allocation9 + $0x68] sm:$0xff]
    %v535 = vld [vmem:[#allocation9 + $0x70] sm:$0xff]
    %v536 = vld [vmem:[#allocation9 + $0x78] sm:$0xff]
    %v537 = vld [vmem:[#allocation9 + $0x80] sm:$0xff]
    %v538 = vld [vmem:[#allocation9 + $0x88] sm:$0xff]
    %v539 = vld [vmem:[#allocation9 + $0x90] sm:$0xff]
    %v540 = vld [vmem:[#allocation9 + $0x98] sm:$0xff]
    %v541 = vld [vmem:[#allocation9 + $0xa0] sm:$0xff]
    %v542 = vld [vmem:[#allocation9 + $0xa8] sm:$0xff]
    %v543 = vld [vmem:[#allocation9 + $0xb0] sm:$0xff]
    %v544 = vld [vmem:[#allocation9 + $0xb8] sm:$0xff]
    %v545 = vld [vmem:[#allocation9 + $0xc0] sm:$0xff]
    %v546 = vld [vmem:[#allocation9 + $0xc8] sm:$0xff]
    %v547 = vld [vmem:[#allocation9 + $0xd0] sm:$0xff]
    %v548 = vld [vmem:[#allocation9 + $0xd8] sm:$0xff]
    %v549 = vld [vmem:[#allocation9 + $0xe0] sm:$0xff]
    %v550 = vld [vmem:[#allocation9 + $0xe8] sm:$0xff]
    %v551 = vld [vmem:[#allocation9 + $0xf0] sm:$0xff]
    %v552 = vld [vmem:[#allocation9 + $0xf8] sm:$0xff]
    %v553 = vld [vmem:[%s6] sm:$0x3]
    %v555 = vlaneseq
    %v556 = vshrl.u32 %v555, 7
    %v557 = vsub.s32 0, %v556
    %v558 = vrot.slane %v553, %v557
    %v559 = vlaneseq
    %v560 = vshrl.u32 %v559, 7
    %v561 = vsub.s32 1, %v560
    %v562 = vrot.slane %v553, %v561
    %v597 = vunpack.c.l.b16 %v521
    %v598 = vunpack.c.h.b16 %v521
    %v599 = vunpack.c.l.b16 %v522
    %v600 = vunpack.c.h.b16 %v522
    %v601 = vunpack.c.l.b16 %v523
    %v602 = vunpack.c.h.b16 %v523
    %v603 = vunpack.c.l.b16 %v524
    %v604 = vunpack.c.h.b16 %v524
    %v605 = vunpack.c.l.b16 %v525
    %v606 = vunpack.c.h.b16 %v525
    %v607 = vunpack.c.l.b16 %v526
    %v608 = vunpack.c.h.b16 %v526
    %v609 = vunpack.c.l.b16 %v527
    %v610 = vunpack.c.h.b16 %v527
    %v611 = vunpack.c.l.b16 %v528
    %v612 = vunpack.c.h.b16 %v528
    %v613 = vunpack.c.l.b16 %v529
    %v614 = vunpack.c.h.b16 %v529
    %v615 = vunpack.c.l.b16 %v530
    %v616 = vunpack.c.h.b16 %v530
    %v617 = vunpack.c.l.b16 %v531
    %v618 = vunpack.c.h.b16 %v531
    %v619 = vunpack.c.l.b16 %v532
    %v620 = vunpack.c.h.b16 %v532
    %v621 = vunpack.c.l.b16 %v533
    %v622 = vunpack.c.h.b16 %v533
    %v623 = vunpack.c.l.b16 %v534
    %v624 = vunpack.c.h.b16 %v534
    %v625 = vunpack.c.l.b16 %v535
    %v626 = vunpack.c.h.b16 %v535
    %v627 = vunpack.c.l.b16 %v536
    %v628 = vunpack.c.h.b16 %v536
    %v629 = vunpack.c.l.b16 %v537
    %v630 = vunpack.c.h.b16 %v537
    %v631 = vunpack.c.l.b16 %v538
    %v632 = vunpack.c.h.b16 %v538
    %v633 = vunpack.c.l.b16 %v539
    %v634 = vunpack.c.h.b16 %v539
    %v635 = vunpack.c.l.b16 %v540
    %v636 = vunpack.c.h.b16 %v540
    %v637 = vunpack.c.l.b16 %v541
    %v638 = vunpack.c.h.b16 %v541
    %v639 = vunpack.c.l.b16 %v542
    %v640 = vunpack.c.h.b16 %v542
    %v641 = vunpack.c.l.b16 %v543
    %v642 = vunpack.c.h.b16 %v543
    %v643 = vunpack.c.l.b16 %v544
    %v644 = vunpack.c.h.b16 %v544
    %v645 = vunpack.c.l.b16 %v545
    %v646 = vunpack.c.h.b16 %v545
    %v647 = vunpack.c.l.b16 %v546
    %v648 = vunpack.c.h.b16 %v546
    %v649 = vunpack.c.l.b16 %v547
    %v650 = vunpack.c.h.b16 %v547
    %v651 = vunpack.c.l.b16 %v548
    %v652 = vunpack.c.h.b16 %v548
    %v653 = vunpack.c.l.b16 %v549
    %v654 = vunpack.c.h.b16 %v549
    %v655 = vunpack.c.l.b16 %v550
    %v656 = vunpack.c.h.b16 %v550
    %v657 = vunpack.c.l.b16 %v551
    %v658 = vunpack.c.h.b16 %v551
    %v659 = vunpack.c.l.b16 %v552
    %v660 = vunpack.c.h.b16 %v552
    %v661 = vpack.c.b16 %v599, %v597
    %v662 = vpack.c.b16 %v600, %v598
    %v663 = vpack.c.b16 %v603, %v601
    %v664 = vpack.c.b16 %v604, %v602
    %v665 = vpack.c.b16 %v607, %v605
    %v666 = vpack.c.b16 %v608, %v606
    %v667 = vpack.c.b16 %v611, %v609
    %v668 = vpack.c.b16 %v612, %v610
    %v669 = vpack.c.b16 %v615, %v613
    %v670 = vpack.c.b16 %v616, %v614
    %v671 = vpack.c.b16 %v619, %v617
    %v672 = vpack.c.b16 %v620, %v618
    %v673 = vpack.c.b16 %v623, %v621
    %v674 = vpack.c.b16 %v624, %v622
    %v675 = vpack.c.b16 %v627, %v625
    %v676 = vpack.c.b16 %v628, %v626
    %v677 = vpack.c.b16 %v631, %v629
    %v678 = vpack.c.b16 %v632, %v630
    %v679 = vpack.c.b16 %v635, %v633
    %v680 = vpack.c.b16 %v636, %v634
    %v681 = vpack.c.b16 %v639, %v637
    %v682 = vpack.c.b16 %v640, %v638
    %v683 = vpack.c.b16 %v643, %v641
    %v684 = vpack.c.b16 %v644, %v642
    %v685 = vpack.c.b16 %v647, %v645
    %v686 = vpack.c.b16 %v648, %v646
    %v687 = vpack.c.b16 %v651, %v649
    %v688 = vpack.c.b16 %v652, %v650
    %v689 = vpack.c.b16 %v655, %v653
    %v690 = vpack.c.b16 %v656, %v654
    %v691 = vpack.c.b16 %v659, %v657
    %v692 = vpack.c.b16 %v660, %v658
    %725 = vmatprep.subr.bf16.mxu0 %v676
    %726 = vmatpush1.bf16.msra.mxu0 %v675
    %727 = vmatprep.subr.bf16.mxu0 %v674
    %728 = vmatpush1.bf16.msra.mxu0 %v673
    %729 = vmatprep.subr.bf16.mxu0 %v672
    %730 = vmatpush1.bf16.msra.mxu0 %v671
    %731 = vmatprep.subr.bf16.mxu0 %v670
    %732 = vmatpush1.bf16.msra.mxu0 %v669
    %733 = vmatprep.subr.bf16.mxu0 %v668
    %734 = vmatpush1.bf16.msra.mxu0 %v667
    %735 = vmatprep.subr.bf16.mxu0 %v666
    %736 = vmatpush1.bf16.msra.mxu0 %v665
    %737 = vmatprep.subr.bf16.mxu0 %v664
    %738 = vmatpush1.bf16.msra.mxu0 %v663
    %739 = vmatprep.subr.bf16.mxu0 %v662
    %740 = vmatpush1.bf16.msra.mxu0 %v661
    %741 = vmatprep.subr.bf16.mxu0 %v692
    %742 = vmatpush2.bf16.msra.mxu0 %v691
    %743 = vmatprep.subr.bf16.mxu0 %v690
    %744 = vmatpush2.bf16.msra.mxu0 %v689
    %745 = vmatprep.subr.bf16.mxu0 %v688
    %746 = vmatpush2.bf16.msra.mxu0 %v687
    %747 = vmatprep.subr.bf16.mxu0 %v686
    %748 = vmatpush2.bf16.msra.mxu0 %v685
    %749 = vmatprep.subr.bf16.mxu0 %v684
    %750 = vmatpush2.bf16.msra.mxu0 %v683
    %751 = vmatprep.subr.bf16.mxu0 %v682
    %752 = vmatpush2.bf16.msra.mxu0 %v681
    %753 = vmatprep.subr.bf16.mxu0 %v680
    %754 = vmatpush2.bf16.msra.mxu0 %v679
    %755 = vmatprep.subr.bf16.mxu0 %v678
    %756 = vmatpush2.bf16.msra.mxu0 %v677
    %757 = vmatprep.mubr.bf16.mxu0 %v275
    %758 = vmatmul.mubr.bf16.gmra.mxu0 %v274
    %v759 = vpop.f32.mrf.mxu0
    %v760 = vadd.f32 %v558, %v759
    %v761 = vpop.f32.mrf.mxu0
    %v762 = vadd.f32 %v562, %v761
    %v763 = vpop.f32.mrf.mxu0
    %v764 = vpop.f32.mrf.mxu0
    %765 = vdwg.mxu0
    %v766 = vmax.f32 %v515, 0.0
    %v767 = vmax.f32 %v517, 0.0
    %v768 = vpack.c.bf16 %v766, %v766
    %v769 = vpack.c.bf16 %v767, %v767
    %v770 = vmax.f32 %v760, 0.0
    %v771 = vmax.f32 %v762, 0.0
    %v772 = vpack.c.bf16 %v770, %v770
    %v773 = vpack.c.bf16 %v771, %v771
    %v774 = vld [vmem:[#allocation10] sm:$0xf]
    %v775 = vld [vmem:[#allocation10 + $0x4] sm:$0xf]
    %v776 = vld [vmem:[#allocation10 + $0x8] sm:$0xf]
    %v777 = vld [vmem:[#allocation10 + $0xc] sm:$0xf]
    %v778 = vld [vmem:[#allocation10 + $0x10] sm:$0xf]
    %v779 = vld [vmem:[#allocation10 + $0x14] sm:$0xf]
    %v780 = vld [vmem:[#allocation10 + $0x18] sm:$0xf]
    %v781 = vld [vmem:[#allocation10 + $0x1c] sm:$0xf]
    %v782 = vld [vmem:[#allocation10 + $0x20] sm:$0xf]
    %v783 = vld [vmem:[#allocation10 + $0x24] sm:$0xf]
    %v784 = vld [vmem:[#allocation10 + $0x28] sm:$0xf]
    %v785 = vld [vmem:[#allocation10 + $0x2c] sm:$0xf]
    %v786 = vld [vmem:[#allocation10 + $0x30] sm:$0xf]
    %v787 = vld [vmem:[#allocation10 + $0x34] sm:$0xf]
    %v788 = vld [vmem:[#allocation10 + $0x38] sm:$0xf]
    %v789 = vld [vmem:[#allocation10 + $0x3c] sm:$0xf]
    %v790 = vld [vmem:[#allocation10 + $0x40] sm:$0xf]
    %v791 = vld [vmem:[#allocation10 + $0x44] sm:$0xf]
    %v792 = vld [vmem:[#allocation10 + $0x48] sm:$0xf]
    %v793 = vld [vmem:[#allocation10 + $0x4c] sm:$0xf]
    %v794 = vld [vmem:[#allocation10 + $0x50] sm:$0xf]
    %v795 = vld [vmem:[#allocation10 + $0x54] sm:$0xf]
    %v796 = vld [vmem:[#allocation10 + $0x58] sm:$0xf]
    %v797 = vld [vmem:[#allocation10 + $0x5c] sm:$0xf]
    %v798 = vld [vmem:[#allocation10 + $0x60] sm:$0xf]
    %v799 = vld [vmem:[#allocation10 + $0x64] sm:$0xf]
    %v800 = vld [vmem:[#allocation10 + $0x68] sm:$0xf]
    %v801 = vld [vmem:[#allocation10 + $0x6c] sm:$0xf]
    %v802 = vld [vmem:[#allocation10 + $0x70] sm:$0xf]
    %v803 = vld [vmem:[#allocation10 + $0x74] sm:$0xf]
    %v804 = vld [vmem:[#allocation10 + $0x78] sm:$0xf]
    %v805 = vld [vmem:[#allocation10 + $0x7c] sm:$0xf]
    %v806 = vld [vmem:[#allocation10 + $0x80] sm:$0xf]
    %v807 = vld [vmem:[#allocation10 + $0x84] sm:$0xf]
    %v808 = vld [vmem:[#allocation10 + $0x88] sm:$0xf]
    %v809 = vld [vmem:[#allocation10 + $0x8c] sm:$0xf]
    %v810 = vld [vmem:[#allocation10 + $0x90] sm:$0xf]
    %v811 = vld [vmem:[#allocation10 + $0x94] sm:$0xf]
    %v812 = vld [vmem:[#allocation10 + $0x98] sm:$0xf]
    %v813 = vld [vmem:[#allocation10 + $0x9c] sm:$0xf]
    %v814 = vld [vmem:[#allocation10 + $0xa0] sm:$0xf]
    %v815 = vld [vmem:[#allocation10 + $0xa4] sm:$0xf]
    %v816 = vld [vmem:[#allocation10 + $0xa8] sm:$0xf]
    %v817 = vld [vmem:[#allocation10 + $0xac] sm:$0xf]
    %v818 = vld [vmem:[#allocation10 + $0xb0] sm:$0xf]
    %v819 = vld [vmem:[#allocation10 + $0xb4] sm:$0xf]
    %v820 = vld [vmem:[#allocation10 + $0xb8] sm:$0xf]
    %v821 = vld [vmem:[#allocation10 + $0xbc] sm:$0xf]
    %v822 = vld [vmem:[#allocation10 + $0xc0] sm:$0xf]
    %v823 = vld [vmem:[#allocation10 + $0xc4] sm:$0xf]
    %v824 = vld [vmem:[#allocation10 + $0xc8] sm:$0xf]
    %v825 = vld [vmem:[#allocation10 + $0xcc] sm:$0xf]
    %v826 = vld [vmem:[#allocation10 + $0xd0] sm:$0xf]
    %v827 = vld [vmem:[#allocation10 + $0xd4] sm:$0xf]
    %v828 = vld [vmem:[#allocation10 + $0xd8] sm:$0xf]
    %v829 = vld [vmem:[#allocation10 + $0xdc] sm:$0xf]
    %v830 = vld [vmem:[#allocation10 + $0xe0] sm:$0xf]
    %v831 = vld [vmem:[#allocation10 + $0xe4] sm:$0xf]
    %v832 = vld [vmem:[#allocation10 + $0xe8] sm:$0xf]
    %v833 = vld [vmem:[#allocation10 + $0xec] sm:$0xf]
    %v834 = vld [vmem:[#allocation10 + $0xf0] sm:$0xf]
    %v835 = vld [vmem:[#allocation10 + $0xf4] sm:$0xf]
    %v836 = vld [vmem:[#allocation10 + $0xf8] sm:$0xf]
    %v837 = vld [vmem:[#allocation10 + $0xfc] sm:$0xf]
    %v902 = vunpack.c.l.b16 %v774
    %v903 = vunpack.c.l.b16 %v775
    %v904 = vunpack.c.l.b16 %v776
    %v905 = vunpack.c.l.b16 %v777
    %v906 = vunpack.c.l.b16 %v778
    %v907 = vunpack.c.l.b16 %v779
    %v908 = vunpack.c.l.b16 %v780
    %v909 = vunpack.c.l.b16 %v781
    %v910 = vunpack.c.l.b16 %v782
    %v911 = vunpack.c.l.b16 %v783
    %v912 = vunpack.c.l.b16 %v784
    %v913 = vunpack.c.l.b16 %v785
    %v914 = vunpack.c.l.b16 %v786
    %v915 = vunpack.c.l.b16 %v787
    %v916 = vunpack.c.l.b16 %v788
    %v917 = vunpack.c.l.b16 %v789
    %v918 = vunpack.c.l.b16 %v790
    %v919 = vunpack.c.l.b16 %v791
    %v920 = vunpack.c.l.b16 %v792
    %v921 = vunpack.c.l.b16 %v793
    %v922 = vunpack.c.l.b16 %v794
    %v923 = vunpack.c.l.b16 %v795
    %v924 = vunpack.c.l.b16 %v796
    %v925 = vunpack.c.l.b16 %v797
    %v926 = vunpack.c.l.b16 %v798
    %v927 = vunpack.c.l.b16 %v799
    %v928 = vunpack.c.l.b16 %v800
    %v929 = vunpack.c.l.b16 %v801
    %v930 = vunpack.c.l.b16 %v802
    %v931 = vunpack.c.l.b16 %v803
    %v932 = vunpack.c.l.b16 %v804
    %v933 = vunpack.c.l.b16 %v805
    %v934 = vunpack.c.l.b16 %v806
    %v935 = vunpack.c.l.b16 %v807
    %v936 = vunpack.c.l.b16 %v808
    %v937 = vunpack.c.l.b16 %v809
    %v938 = vunpack.c.l.b16 %v810
    %v939 = vunpack.c.l.b16 %v811
    %v940 = vunpack.c.l.b16 %v812
    %v941 = vunpack.c.l.b16 %v813
    %v942 = vunpack.c.l.b16 %v814
    %v943 = vunpack.c.l.b16 %v815
    %v944 = vunpack.c.l.b16 %v816
    %v945 = vunpack.c.l.b16 %v817
    %v946 = vunpack.c.l.b16 %v818
    %v947 = vunpack.c.l.b16 %v819
    %v948 = vunpack.c.l.b16 %v820
    %v949 = vunpack.c.l.b16 %v821
    %v950 = vunpack.c.l.b16 %v822
    %v951 = vunpack.c.l.b16 %v823
    %v952 = vunpack.c.l.b16 %v824
    %v953 = vunpack.c.l.b16 %v825
    %v954 = vunpack.c.l.b16 %v826
    %v955 = vunpack.c.l.b16 %v827
    %v956 = vunpack.c.l.b16 %v828
    %v957 = vunpack.c.l.b16 %v829
    %v958 = vunpack.c.l.b16 %v830
    %v959 = vunpack.c.l.b16 %v831
    %v960 = vunpack.c.l.b16 %v832
    %v961 = vunpack.c.l.b16 %v833
    %v962 = vunpack.c.l.b16 %v834
    %v963 = vunpack.c.l.b16 %v835
    %v964 = vunpack.c.l.b16 %v836
    %v965 = vunpack.c.l.b16 %v837
    %v966 = vpack.c.b16 %v903, %v902
    %v967 = vpack.c.b16 %v905, %v904
    %v968 = vpack.c.b16 %v907, %v906
    %v969 = vpack.c.b16 %v909, %v908
    %v970 = vpack.c.b16 %v911, %v910
    %v971 = vpack.c.b16 %v913, %v912
    %v972 = vpack.c.b16 %v915, %v914
    %v973 = vpack.c.b16 %v917, %v916
    %v974 = vpack.c.b16 %v919, %v918
    %v975 = vpack.c.b16 %v921, %v920
    %v976 = vpack.c.b16 %v923, %v922
    %v977 = vpack.c.b16 %v925, %v924
    %v978 = vpack.c.b16 %v927, %v926
    %v979 = vpack.c.b16 %v929, %v928
    %v980 = vpack.c.b16 %v931, %v930
    %v981 = vpack.c.b16 %v933, %v932
    %v982 = vpack.c.b16 %v935, %v934
    %v983 = vpack.c.b16 %v937, %v936
    %v984 = vpack.c.b16 %v939, %v938
    %v985 = vpack.c.b16 %v941, %v940
    %v986 = vpack.c.b16 %v943, %v942
    %v987 = vpack.c.b16 %v945, %v944
    %v988 = vpack.c.b16 %v947, %v946
    %v989 = vpack.c.b16 %v949, %v948
    %v990 = vpack.c.b16 %v951, %v950
    %v991 = vpack.c.b16 %v953, %v952
    %v992 = vpack.c.b16 %v955, %v954
    %v993 = vpack.c.b16 %v957, %v956
    %v994 = vpack.c.b16 %v959, %v958
    %v995 = vpack.c.b16 %v961, %v960
    %v996 = vpack.c.b16 %v963, %v962
    %v997 = vpack.c.b16 %v965, %v964
    %1030 = vmatprep.subr.bf16.mxu0 0
    %1031 = vmatpush1.bf16.msra.mxu0 %v973
    %1032 = vmatprep.subr.bf16.mxu0 0
    %1033 = vmatpush1.bf16.msra.mxu0 %v972
    %1034 = vmatprep.subr.bf16.mxu0 0
    %1035 = vmatpush1.bf16.msra.mxu0 %v971
    %1036 = vmatprep.subr.bf16.mxu0 0
    %1037 = vmatpush1.bf16.msra.mxu0 %v970
    %1038 = vmatprep.subr.bf16.mxu0 0
    %1039 = vmatpush1.bf16.msra.mxu0 %v969
    %1040 = vmatprep.subr.bf16.mxu0 0
    %1041 = vmatpush1.bf16.msra.mxu0 %v968
    %1042 = vmatprep.subr.bf16.mxu0 0
    %1043 = vmatpush1.bf16.msra.mxu0 %v967
    %1044 = vmatprep.subr.bf16.mxu0 0
    %1045 = vmatpush1.bf16.msra.mxu0 %v966
    %1046 = vmatprep.subr.bf16.mxu0 0
    %1047 = vmatpush2.bf16.msra.mxu0 %v981
    %1048 = vmatprep.subr.bf16.mxu0 0
    %1049 = vmatpush2.bf16.msra.mxu0 %v980
    %1050 = vmatprep.subr.bf16.mxu0 0
    %1051 = vmatpush2.bf16.msra.mxu0 %v979
    %1052 = vmatprep.subr.bf16.mxu0 0
    %1053 = vmatpush2.bf16.msra.mxu0 %v978
    %1054 = vmatprep.subr.bf16.mxu0 0
    %1055 = vmatpush2.bf16.msra.mxu0 %v977
    %1056 = vmatprep.subr.bf16.mxu0 0
    %1057 = vmatpush2.bf16.msra.mxu0 %v976
    %1058 = vmatprep.subr.bf16.mxu0 0
    %1059 = vmatpush2.bf16.msra.mxu0 %v975
    %1060 = vmatprep.subr.bf16.mxu0 0
    %1061 = vmatpush2.bf16.msra.mxu0 %v974
    %1062 = vmatprep.mubr.bf16.mxu0 %v769
    %1063 = vmatmul.mubr.bf16.gmra.mxu0 %v768
    %v1064 = vpop.f32.mrf.mxu0
    %v1065 = vadd.f32 0.0, %v1064
    %v1066 = vpop.f32.mrf.mxu0
    %v1067 = vpop.f32.mrf.mxu0
    %v1068 = vpop.f32.mrf.mxu0
    %1069 = vdwg.mxu0
    %1070 = vmatprep.subr.bf16.mxu0 0
    %1071 = vmatpush1.bf16.msra.mxu0 %v989
    %1072 = vmatprep.subr.bf16.mxu0 0
    %1073 = vmatpush1.bf16.msra.mxu0 %v988
    %1074 = vmatprep.subr.bf16.mxu0 0
    %1075 = vmatpush1.bf16.msra.mxu0 %v987
    %1076 = vmatprep.subr.bf16.mxu0 0
    %1077 = vmatpush1.bf16.msra.mxu0 %v986
    %1078 = vmatprep.subr.bf16.mxu0 0
    %1079 = vmatpush1.bf16.msra.mxu0 %v985
    %1080 = vmatprep.subr.bf16.mxu0 0
    %1081 = vmatpush1.bf16.msra.mxu0 %v984
    %1082 = vmatprep.subr.bf16.mxu0 0
    %1083 = vmatpush1.bf16.msra.mxu0 %v983
    %1084 = vmatprep.subr.bf16.mxu0 0
    %1085 = vmatpush1.bf16.msra.mxu0 %v982
    %1086 = vmatprep.subr.bf16.mxu0 0
    %1087 = vmatpush2.bf16.msra.mxu0 %v997
    %1088 = vmatprep.subr.bf16.mxu0 0
    %1089 = vmatpush2.bf16.msra.mxu0 %v996
    %1090 = vmatprep.subr.bf16.mxu0 0
    %1091 = vmatpush2.bf16.msra.mxu0 %v995
    %1092 = vmatprep.subr.bf16.mxu0 0
    %1093 = vmatpush2.bf16.msra.mxu0 %v994
    %1094 = vmatprep.subr.bf16.mxu0 0
    %1095 = vmatpush2.bf16.msra.mxu0 %v993
    %1096 = vmatprep.subr.bf16.mxu0 0
    %1097 = vmatpush2.bf16.msra.mxu0 %v992
    %1098 = vmatprep.subr.bf16.mxu0 0
    %1099 = vmatpush2.bf16.msra.mxu0 %v991
    %1100 = vmatprep.subr.bf16.mxu0 0
    %1101 = vmatpush2.bf16.msra.mxu0 %v990
    %1102 = vmatprep.mubr.bf16.mxu0 %v773
    %1103 = vmatmul.mubr.bf16.gmra.mxu0 %v772
    %v1104 = vpop.f32.mrf.mxu0
    %v1105 = vadd.f32 %v1065, %v1104
    %v1106 = vpop.f32.mrf.mxu0
    %v1107 = vpop.f32.mrf.mxu0
    %v1108 = vpop.f32.mrf.mxu0
    %1109 = vdwg.mxu0
    %v1110 = vld [vmem:[%s8] sm:$0x1]
    %v1112 = vlaneseq
    %v1113 = vshrl.u32 %v1112, 7
    %v1114 = vsub.s32 0, %v1113
    %v1115 = vrot.slane %v1110, %v1114
    %v1117 = vadd.f32 %v1105, %v1115
    %vm1118 = vcmask 15360
    %v1119 = vsel %vm1118, %v1117, inf
    %1120 = vmin.xlane.f32.xlu0 %v1119
    %v1121 = vpop.xlane.xlu0 %1120
    %vm1122 = vcmask 7168
    %1123 = vst.msk [vmem:[%s9] sm:$0xff] %vm1122, %v1121
    // Predicated region
    $region62: #{tpu_custom_call.1} parent=1 // pred_check
      _
    $region63: #{tpu_custom_call.1} parent=1 // pred_check_branch
      %1125 = sbr.rel (0) target = $region65
    $region64: #{tpu_custom_call.1} parent=1 // pred_region
      _
    $region65: #{tpu_custom_call.1} parent=1 // pred_fallthru
      _
    // Predicated region
    $region66: #{tpu_custom_call.1} parent=1 // pred_check
      _
    $region67: #{tpu_custom_call.1} parent=1 // pred_check_branch
      %1127 = sbr.rel (0) target = $region69
    $region68: #{tpu_custom_call.1} parent=1 // pred_region
      _
    $region69: #{tpu_custom_call.1} parent=1 // pred_fallthru
      _
    %1128 = vsyncpa [#allocation3], 1
    %1129 = vsyncpa [#allocation5], 1
    %1130 = vsyncpa [#allocation8], 1
    %1131 = vsyncpa [#allocation11], 1

</llo_original>
